<compile_context>
chip_gen: v5e
topology: v5e:2x2
jax: 0.10.0
libtpu: 0.0.40
codegen_flags: <defaults>
</compile_context>

<pallas_src>
import functools
import math

import jax
import jax.numpy as jnp
from jax.experimental import pallas as pl
from jax.experimental.pallas import tpu as pltpu

_LANE = 128          # TPU vreg lane width; events map onto lanes.
_MAX_TILE_E = 2048   # events per grid step at scale (sweep 1024-2048; ~1 MiB/buf).


def _round_up(x, m):
    return (x + m - 1) // m * m


def _choose_tile_e(E):
    """Lane-aligned event tile.

    Big enough to amortize the ~0.35us per-grid-step overhead, but split >= 2
    ways whenever E allows it so both v7x TensorCores get work (the grid axis
    is 'parallel'); no effect on v5e/v6e (1 TC).
    """
    two_way = _round_up(pl.cdiv(E, 2), _LANE)
    return max(_LANE, min(_MAX_TILE_E, two_way))


def _jodie_update_kernel(ui_ref, w_comb_ref, b_comb_ref, w_p_ref, b_p_ref,
                         out_ref, sse_ref):
    """One tile of events (events on LANES): fused coupled-RNN update + pred error.

    ui_ref     : (2D, tile_e) bf16  [u ; i] event embeddings, one event per lane
    w_comb_ref : (2D, 2D)     bf16  [[W_uu^T, W_ui^T], [W_iu^T, W_ii^T]]
    b_comb_ref : (2D, 1)      f32   [b_u ; b_i]
    w_p_ref    : (D, D)       bf16  W_p^T           b_p_ref : (D, 1) f32
    out_ref    : (2D, tile_e) f32   [u_new ; i_new]  (merged output)
    sse_ref    : (1, 1, tile_e) f32 per-event squared prediction error
    """
    d = w_p_ref.shape[0]

    # Single fused MXU matmul (bf16 operands, f32 accumulation) replaces the
    # 4 small (D x D) recurrent matmuls.
    z = (jnp.dot(w_comb_ref[...], ui_ref[...],
                 preferred_element_type=jnp.float32)
         + b_comb_ref[...])                       # (2D, tile_e) f32
    new = jnp.tanh(z)                             # lane-dense EUP work, f32
    u_new = new[:d, :]
    i_new = new[d:, :]

    pred = (jnp.dot(w_p_ref[...], u_new.astype(w_p_ref.dtype),
                    preferred_element_type=jnp.float32)
            + b_p_ref[...])                       # (D, tile_e) f32
    diff = pred - i_new

    # Merged lane-dense store of [u_new ; i_new].
    out_ref[...] = new.astype(out_ref.dtype)

    # Per-event (per-lane) squared-error partials: one private row per grid
    # step, no cross-step accumulation -> the grid axis stays "parallel" and
    # every store is full lane width.  Tail-padded events are dropped by the
    # wrapper's slice before the final reduction.
    sse_ref[...] = jnp.sum(diff * diff, axis=0, keepdims=True)[jnp.newaxis]


def jodie_update(u_emb, i_emb, kernel_params, *, tile_e=None):
    """Pallas wrapper: (E, D) user / item embedding batches -> updates + MSE loss."""
    E, D = u_emb.shape
    w_comb_t, b_comb_t, w_p_t, b_p_t = kernel_params
    assert w_p_t.shape == (D, D)

    if tile_e is None:
        tile_e = _choose_tile_e(E)
    assert tile_e % _LANE == 0
    num_tiles = pl.cdiv(E, tile_e)
    e_pad = num_tiles * tile_e

    # Events on the LANE axis: (2D, E) bf16 slab, zero-padded ragged tail.
    # (No Dp=128 lane padding of the embedding dim and half-width operands ->
    #  ~8x less event HBM traffic than the previous padded-f32 version.)
    ui_t = jnp.concatenate([u_emb.T, i_emb.T], axis=0).astype(jnp.bfloat16)
    ui_t = jnp.pad(ui_t, ((0, 0), (0, e_pad - E)))

    ev_in_spec = pl.BlockSpec((2 * D, tile_e), lambda t: (0, t))
    ev_out_spec = pl.BlockSpec((2 * D, tile_e), lambda t: (0, t))
    # Grid-invariant weights (constant index_map).  After de-padding + bf16 the
    # combined weights are <= 8 KiB, so the default double buffer (~16 KiB
    # total) is negligible and pl.Buffered(1) is unnecessary.
    w_comb_spec = pl.BlockSpec((2 * D, 2 * D), lambda t: (0, 0))
    b_comb_spec = pl.BlockSpec((2 * D, 1), lambda t: (0, 0))
    w_p_spec = pl.BlockSpec((D, D), lambda t: (0, 0))
    b_p_spec = pl.BlockSpec((D, 1), lambda t: (0, 0))
    sse_spec = pl.BlockSpec((1, 1, tile_e), lambda t: (t, 0, 0))

    out_shapes = (
        jax.ShapeDtypeStruct((2 * D, e_pad), jnp.float32),          # [u_new ; i_new]
        jax.ShapeDtypeStruct((num_tiles, 1, tile_e), jnp.float32),  # per-event SSE
    )

    new_t, sse = pl.pallas_call(
        _jodie_update_kernel,
        grid=(num_tiles,),
        in_specs=[ev_in_spec, w_comb_spec, b_comb_spec, w_p_spec, b_p_spec],
        out_specs=(ev_out_spec, sse_spec),
        out_shape=out_shapes,
        compiler_params=pltpu.CompilerParams(
            dimension_semantics=("parallel",),
            vmem_limit_bytes=32 * 1024 * 1024),
    )(ui_t, w_comb_t, b_comb_t, w_p_t, b_p_t)

    new_t = new_t[:, :E]                       # drop padded tail events
    u_new = new_t[:D, :].T                     # (E, D) f32
    i_new = new_t[D:, :].T                     # (E, D) f32
    # MSE over real events only (padded lanes sliced away).
    loss = jnp.sum(sse.reshape(-1)[:E]) / jnp.float32(E * D)
    return u_new, i_new, loss


def init_jodie_params(key, D):
    """Deterministic nn.Linear-style init (uniform +-1/sqrt(D)), f32 logical params."""
    bound = 1.0 / math.sqrt(D)
    ks = jax.random.split(key, 8)
    uni = lambda k, shape: jax.random.uniform(
        k, shape, dtype=jnp.float32, minval=-bound, maxval=bound)
    w_uu = uni(ks[0], (D, D))
    w_ui = uni(ks[1], (D, D))
    b_u = uni(ks[2], (1, D))
    w_ii = uni(ks[3], (D, D))
    w_iu = uni(ks[4], (D, D))
    b_i = uni(ks[5], (1, D))
    w_p = uni(ks[6], (D, D))
    b_p = uni(ks[7], (1, D))
    return (w_uu, w_ui, b_u, w_ii, w_iu, b_i, w_p, b_p)


def prepare_jodie_kernel_params(params):
    """Precompute fused / transposed / bf16 kernel operands ONCE (hoisted out of
    the per-forward path).  With z^T = W_comb^T @ [u;i]^T:
        rows [:D]  -> u' pre-activation, rows [D:] -> i' pre-activation.
    """
    w_uu, w_ui, b_u, w_ii, w_iu, b_i, w_p, b_p = params
    w_comb_t = jnp.block([[w_uu.T, w_ui.T],
                          [w_iu.T, w_ii.T]]).astype(jnp.bfloat16)          # (2D, 2D)
    b_comb_t = jnp.concatenate([b_u, b_i], axis=-1).T.astype(jnp.float32)  # (2D, 1)
    w_p_t = w_p.T.astype(jnp.bfloat16)                                     # (D, D)
    b_p_t = b_p.T.astype(jnp.float32)                                      # (D, 1)
    return (w_comb_t, b_comb_t, w_p_t, b_p_t)


@functools.partial(jax.jit, static_argnames=("num_users",))
def meta_mobility_forward(X_jodie, X_meta, events_u, events_l, kernel_params, *,
                          num_users):
    """Mirror of MetaMobility.forward: (X_jodie', X_meta, loss_jodie, loss_jodie).

    The meta-GNN branch is commented out in the reference forward(), so X_meta
    is a pure pass-through, exactly as in the PyTorch module.
    """
    E = events_u.shape[0]
    # Single concatenated gather (users then locations offset into the table).
    idx_all = jnp.concatenate([events_u, num_users + events_l])   # (2E,)
    emb_all = X_jodie[idx_all]                                    # (2E, D)
    u_emb = emb_all[:E]
    i_emb = emb_all[E:]

    u_new, i_new, loss = jodie_update(u_emb, i_emb, kernel_params)

    # Single concatenated scatter (one table pass instead of two).
    # TODO(synk): at production table sizes, move this gather/scatter into the
    # kernel (PrefetchScalarGridSpec row indices + manual DMA from
    # memory_space=pl.ANY + input_output_aliases) to avoid the remaining
    # full-table HBM round trips per forward.
    X_jodie_new = X_jodie.at[idx_all].set(jnp.concatenate([u_new, i_new], axis=0))
    return X_jodie_new, X_meta, loss, loss


def _jodie_reference(u_emb, i_emb, params):
    """Pure-JAX reference of the same update (for correctness check)."""
    w_uu, w_ui, b_u, w_ii, w_iu, b_i, w_p, b_p = params
    dot = functools.partial(jnp.dot, precision=jax.lax.Precision.HIGHEST)
    u_new = jnp.tanh(dot(u_emb, w_uu) + dot(i_emb, w_ui) + b_u)
    i_new = jnp.tanh(dot(i_emb, w_ii) + dot(u_emb, w_iu) + b_i)
    pred = dot(u_new, w_p) + b_p
    diff = pred - i_new
    E, D = u_emb.shape
    return u_new, i_new, jnp.sum(diff * diff) / (E * D)


if __name__ == "__main__":
    key = jax.random.PRNGKey(0)
    k_x, k_meta, k_u, k_l, k_par, k_u2, k_i2 = jax.random.split(key, 7)

    num_users = 16
    num_locas = 24
    D = 32            # embedding_dynamic_size
    E = 16            # events in the t-batch
    N = num_users + num_locas

    X_jodie = jax.random.normal(k_x, (N, D), dtype=jnp.float32)
    X_meta = jax.random.normal(k_meta, (N, D), dtype=jnp.float32)

    # t-batch with unique user / location indices: batched gather->update->scatter
    # only matches sequential JODIE semantics when indices are unique per t-batch.
    events_u = jax.random.permutation(k_u, num_users)[:E]
    events_l = jax.random.permutation(k_l, num_locas)[:E]

    params = init_jodie_params(k_par, D)
    kernel_params = prepare_jodie_kernel_params(params)   # hoisted, computed once

    X_new, X_meta_out, loss_jodie, loss_jodie2 = meta_mobility_forward(
        X_jodie, X_meta, events_u, events_l, kernel_params, num_users=num_users)
    jax.block_until_ready((X_new, X_meta_out, loss_jodie, loss_jodie2))

    # --- correctness vs. pure-JAX reference (single-tile path) ---
    u_emb = X_jodie[events_u]
    i_emb = X_jodie[num_users + events_l]
    u_k, i_k, loss_k = jodie_update(u_emb, i_emb, kernel_params)
    u_r, i_r, loss_r = _jodie_reference(u_emb, i_emb, params)
    # Tolerance reflects bf16 MXU operands (f32 accumulation / tanh).
    assert jnp.allclose(u_k, u_r, rtol=3e-2, atol=3e-2)
    assert jnp.allclose(i_k, i_r, rtol=3e-2, atol=3e-2)
    assert jnp.allclose(loss_k, loss_r, rtol=3e-2, atol=3e-2)

    # --- multi-tile + ragged-tail path (2 lane tiles, last one part-filled) ---
    E2 = 160
    u2 = jax.random.normal(k_u2, (E2, D), dtype=jnp.float32)
    i2 = jax.random.normal(k_i2, (E2, D), dtype=jnp.float32)
    u_k2, i_k2, loss_k2 = jodie_update(u2, i2, kernel_params)
    u_r2, i_r2, loss_r2 = _jodie_reference(u2, i2, params)
    assert u_k2.shape == (E2, D) and i_k2.shape == (E2, D)
    assert jnp.allclose(u_k2, u_r2, rtol=3e-2, atol=3e-2)
    assert jnp.allclose(i_k2, i_r2, rtol=3e-2, atol=3e-2)
    assert jnp.allclose(loss_k2, loss_r2, rtol=3e-2, atol=3e-2)

    # Forward-pass invariants of MetaMobility.forward.
    assert X_new.shape == (N, D)
    assert jnp.array_equal(X_meta_out, X_meta)   # meta branch is a pass-through
    assert loss_jodie.shape == ()
    assert bool(jnp.isfinite(loss_jodie))
    assert bool(jnp.allclose(loss_jodie, loss_jodie2))
    print("KERNEL_OK")
</pallas_src>

<mosaic_0001>
module attributes {stable_mosaic.version = 11 : i64} {
  func.func @_jodie_update_kernel(%arg0: i32, %arg1: memref<64x128xbf16, #tpu.memory_space<vmem>>, %arg2: memref<64x64xbf16, #tpu.memory_space<vmem>>, %arg3: memref<64x1xf32, #tpu.memory_space<vmem>>, %arg4: memref<32x32xbf16, #tpu.memory_space<vmem>>, %arg5: memref<32x1xf32, #tpu.memory_space<vmem>>, %arg6: memref<64x128xf32, #tpu.memory_space<vmem>>, %arg7: memref<1x1x128xf32, #tpu.memory_space<vmem>>) attributes {dimension_semantics = [#tpu.dimension_semantics<parallel>], iteration_bounds = array<i64: 1>, scalar_prefetch = 0 : i64, scratch_operands = 0 : i64, tpu.core_type = #tpu.core_type<tc>, window_params = [{transform_indices = @transform_0, window_bounds = array<i64: 64, 128>}, {pipeline_mode = #tpu.pipeline_mode<synchronous>, transform_indices = @transform_1, window_bounds = array<i64: 64, 64>}, {pipeline_mode = #tpu.pipeline_mode<synchronous>, transform_indices = @transform_2, window_bounds = array<i64: 64, 1>}, {pipeline_mode = #tpu.pipeline_mode<synchronous>, transform_indices = @transform_3, window_bounds = array<i64: 32, 32>}, {pipeline_mode = #tpu.pipeline_mode<synchronous>, transform_indices = @transform_4, window_bounds = array<i64: 32, 1>}, {transform_indices = @transform_5, window_bounds = array<i64: 64, 128>}, {transform_indices = @transform_6, window_bounds = array<i64: 1, 1, 128>}]} {
    %c0 = arith.constant 0 : index
    %c0_0 = arith.constant 0 : index
    %0 = vector.load %arg2[%c0, %c0_0] : memref<64x64xbf16, #tpu.memory_space<vmem>>, vector<64x64xbf16>
    %c0_1 = arith.constant 0 : index
    %c0_2 = arith.constant 0 : index
    %1 = vector.load %arg1[%c0_1, %c0_2] : memref<64x128xbf16, #tpu.memory_space<vmem>>, vector<64x128xbf16>
    %cst = arith.constant dense<0.000000e+00> : vector<64x128xf32>
    %2 = tpu.matmul %0, %1, %cst {dimension_numbers = #tpu.dot_dimension_numbers<[1], [0], [0], [1], [0, 0, 1, 1], [], []>} : vector<64x64xbf16>, vector<64x128xbf16>, vector<64x128xf32> -> vector<64x128xf32>
    %c0_3 = arith.constant 0 : index
    %c0_4 = arith.constant 0 : index
    %3 = vector.load %arg3[%c0_3, %c0_4] : memref<64x1xf32, #tpu.memory_space<vmem>>, vector<64x1xf32>
    %4 = vector.broadcast %3 : vector<64x1xf32> to vector<64x128xf32>
    %5 = arith.addf %2, %4 : vector<64x128xf32>
    %6 = math.tanh %5 : vector<64x128xf32>
    %7 = vector.extract_strided_slice %6 {offsets = [0, 0], sizes = [32, 128], strides = [1, 1]} : vector<64x128xf32> to vector<32x128xf32>
    %8 = vector.extract_strided_slice %6 {offsets = [32, 0], sizes = [32, 128], strides = [1, 1]} : vector<64x128xf32> to vector<32x128xf32>
    %c0_5 = arith.constant 0 : index
    %c0_6 = arith.constant 0 : index
    %9 = vector.load %arg4[%c0_5, %c0_6] : memref<32x32xbf16, #tpu.memory_space<vmem>>, vector<32x32xbf16>
    %10 = arith.truncf %7 : vector<32x128xf32> to vector<32x128xbf16>
    %cst_7 = arith.constant dense<0.000000e+00> : vector<32x128xf32>
    %11 = tpu.matmul %9, %10, %cst_7 {dimension_numbers = #tpu.dot_dimension_numbers<[1], [0], [0], [1], [0, 0, 1, 1], [], []>} : vector<32x32xbf16>, vector<32x128xbf16>, vector<32x128xf32> -> vector<32x128xf32>
    %c0_8 = arith.constant 0 : index
    %c0_9 = arith.constant 0 : index
    %12 = vector.load %arg5[%c0_8, %c0_9] : memref<32x1xf32, #tpu.memory_space<vmem>>, vector<32x1xf32>
    %13 = vector.broadcast %12 : vector<32x1xf32> to vector<32x128xf32>
    %14 = arith.addf %11, %13 : vector<32x128xf32>
    %15 = arith.subf %14, %8 : vector<32x128xf32>
    %c0_10 = arith.constant 0 : index
    %c0_11 = arith.constant 0 : index
    %16 = vector.load %arg6[%c0_10, %c0_11] : memref<64x128xf32, #tpu.memory_space<vmem>>, vector<64x128xf32>
    tpu.vector_store %arg6[%c0_10, %c0_11], %6 {strides = array<i32>} : memref<64x128xf32, #tpu.memory_space<vmem>>, vector<64x128xf32>,
    %17 = arith.mulf %15, %15 : vector<32x128xf32>
    %cst_12 = arith.constant dense<0.000000e+00> : vector<128xf32>
    %18 = vector.multi_reduction <add>, %17, %cst_12 [0] : vector<32x128xf32> to vector<128xf32>
    %19 = vector.shape_cast %18 : vector<128xf32> to vector<1x128xf32>
    %20 = vector.shape_cast %19 : vector<1x128xf32> to vector<1x1x128xf32>
    %c0_13 = arith.constant 0 : index
    %c0_14 = arith.constant 0 : index
    %c0_15 = arith.constant 0 : index
    %21 = vector.load %arg7[%c0_13, %c0_14, %c0_15] : memref<1x1x128xf32, #tpu.memory_space<vmem>>, vector<1x1x128xf32>
    tpu.vector_store %arg7[%c0_13, %c0_14, %c0_15], %20 {strides = array<i32>} : memref<1x1x128xf32, #tpu.memory_space<vmem>>, vector<1x1x128xf32>,
    return
  }
  func.func @transform_0(%arg0: i32) -> (i32, i32) {
    %c0_i32 = arith.constant 0 : i32
    %c0_i32_0 = arith.constant 0 : i32
    return %c0_i32, %arg0 : i32, i32
  }
  func.func @transform_1(%arg0: i32) -> (i32, i32) {
    %c0_i32 = arith.constant 0 : i32
    %c0_i32_0 = arith.constant 0 : i32
    %c0_i32_1 = arith.constant 0 : i32
    return %c0_i32, %c0_i32_0 : i32, i32
  }
  func.func @transform_2(%arg0: i32) -> (i32, i32) {
    %c0_i32 = arith.constant 0 : i32
    %c0_i32_0 = arith.constant 0 : i32
    %c0_i32_1 = arith.constant 0 : i32
    return %c0_i32, %c0_i32_0 : i32, i32
  }
  func.func @transform_3(%arg0: i32) -> (i32, i32) {
    %c0_i32 = arith.constant 0 : i32
    %c0_i32_0 = arith.constant 0 : i32
    %c0_i32_1 = arith.constant 0 : i32
    return %c0_i32, %c0_i32_0 : i32, i32
  }
  func.func @transform_4(%arg0: i32) -> (i32, i32) {
    %c0_i32 = arith.constant 0 : i32
    %c0_i32_0 = arith.constant 0 : i32
    %c0_i32_1 = arith.constant 0 : i32
    return %c0_i32, %c0_i32_0 : i32, i32
  }
  func.func @transform_5(%arg0: i32) -> (i32, i32) {
    %c0_i32 = arith.constant 0 : i32
    %c0_i32_0 = arith.constant 0 : i32
    return %c0_i32, %arg0 : i32, i32
  }
  func.func @transform_6(%arg0: i32) -> (i32, i32, i32) {
    %c0_i32 = arith.constant 0 : i32
    %c0_i32_0 = arith.constant 0 : i32
    %c0_i32_1 = arith.constant 0 : i32
    return %arg0, %c0_i32, %c0_i32_0 : i32, i32, i32
  }
}

</mosaic_0001>

<llo_original>
// kernel: meta_mobility_forward.1
$region0: #{meta_mobility_forward.1}
  #allocation0 [shape = 'u32[]', space=smem, size = 0x4, offset = 0x4, fixed_abs, tag = 'smem constant byte address 0x4 - core index']
  #allocation1 [shape = 'u32[72,128]{1,0:T(1,128)}', space=vmem, size = 0x9000, scoped, tag = 'internal scratch']
  %s0 = inlined_call_operand.vmem [shape: bf16[64,128], index: 0, kind: input, shape index: {}]
  %s1 = inlined_call_operand.vmem [shape: bf16[64,64], index: 1, kind: input, shape index: {}]
  %s2 = inlined_call_operand.vmem [shape: f32[64,1], index: 2, kind: input, shape index: {}]
  %s3 = inlined_call_operand.vmem [shape: bf16[32,32], index: 3, kind: input, shape index: {}]
  %s4 = inlined_call_operand.vmem [shape: f32[32,1], index: 4, kind: input, shape index: {}]
  %s5 = inlined_call_operand.vmem [shape: f32[64,128], index: 5, kind: output, shape index: {0}]
  %s6 = inlined_call_operand.vmem [shape: f32[1,1,128], index: 6, kind: output, shape index: {1}]
  %7 = xla_tuple %s5, %s6
  %s8 = sld [smem:[#allocation0]]
  $region38: #{meta_mobility_forward.1} parent=0
    _
  %s10 = ssub.s32 1, %s8
  %s11 = scalar_select 0, %s10, %s8
  // Predicated region
  $region2: #{meta_mobility_forward.1} parent=0 // pred_check
    _
  $region3: #{meta_mobility_forward.1} parent=0 // pred_check_branch
    %13 = sbr.rel (0) target = $region5
  $region4: #{meta_mobility_forward.1} parent=0 // pred_region
    _
  $region5: #{meta_mobility_forward.1} parent=0 // pred_fallthru
    _
  // Predicated region
  $region6: #{meta_mobility_forward.1} parent=0 // pred_check
    _
  $region7: #{meta_mobility_forward.1} parent=0 // pred_check_branch
    %15 = sbr.rel (0) target = $region9
  $region8: #{meta_mobility_forward.1} parent=0 // pred_region
    _
  $region9: #{meta_mobility_forward.1} parent=0 // pred_fallthru
    _
  // Predicated region
  $region10: #{meta_mobility_forward.1} parent=0 // pred_check
    _
  $region11: #{meta_mobility_forward.1} parent=0 // pred_check_branch
    %17 = sbr.rel (0) target = $region13
  $region12: #{meta_mobility_forward.1} parent=0 // pred_region
    _
  $region13: #{meta_mobility_forward.1} parent=0 // pred_fallthru
    _
  // Predicated region
  $region14: #{meta_mobility_forward.1} parent=0 // pred_check
    _
  $region15: #{meta_mobility_forward.1} parent=0 // pred_check_branch
    %19 = sbr.rel (0) target = $region17
  $region16: #{meta_mobility_forward.1} parent=0 // pred_region
    _
  $region17: #{meta_mobility_forward.1} parent=0 // pred_fallthru
    _
  // Predicated region
  $region18: #{meta_mobility_forward.1} parent=0 // pred_check
    _
  $region19: #{meta_mobility_forward.1} parent=0 // pred_check_branch
    %21 = sbr.rel (0) target = $region21
  $region20: #{meta_mobility_forward.1} parent=0 // pred_region
    _
  $region21: #{meta_mobility_forward.1} parent=0 // pred_fallthru
    _
  %v23 = vld [vmem:[%s1] sm:$0xf]
  %v24 = vld [vmem:[%s1 + $0x4] sm:$0xf]
  %v25 = vld [vmem:[%s1 + $0x8] sm:$0xf]
  %v26 = vld [vmem:[%s1 + $0xc] sm:$0xf]
  %v27 = vld [vmem:[%s1 + $0x10] sm:$0xf]
  %v28 = vld [vmem:[%s1 + $0x14] sm:$0xf]
  %v29 = vld [vmem:[%s1 + $0x18] sm:$0xf]
  %v30 = vld [vmem:[%s1 + $0x1c] sm:$0xf]
  %v31 = vld [vmem:[%s0] sm:$0xf]
  %v32 = vld [vmem:[%s0 + $0x4] sm:$0xf]
  %v33 = vld [vmem:[%s0 + $0x8] sm:$0xf]
  %v34 = vld [vmem:[%s0 + $0xc] sm:$0xf]
  %v35 = vld [vmem:[%s0 + $0x10] sm:$0xf]
  %v36 = vld [vmem:[%s0 + $0x14] sm:$0xf]
  %v37 = vld [vmem:[%s0 + $0x18] sm:$0xf]
  %v38 = vld [vmem:[%s0 + $0x1c] sm:$0xf]
  %v39 = vld [vmem:[%s2] sm:$0xff]
  %v40 = vld [vmem:[%s2 + $0x8] sm:$0xff]
  %v41 = vld [vmem:[%s2 + $0x10] sm:$0xff]
  %v42 = vld [vmem:[%s2 + $0x18] sm:$0xff]
  %v43 = vld [vmem:[%s2 + $0x20] sm:$0xff]
  %v44 = vld [vmem:[%s2 + $0x28] sm:$0xff]
  %v45 = vld [vmem:[%s2 + $0x30] sm:$0xff]
  %v46 = vld [vmem:[%s2 + $0x38] sm:$0xff]
  %48 = vset.pattern.permute.xlu0 0
  %49 = vperm.xlu0 %48, %v39
  %v50 = vpop.permute.xlu0 %49
  %53 = vset.pattern.permute.xlu0 0
  %54 = vperm.xlu0 %53, %v40
  %v55 = vpop.permute.xlu0 %54
  %58 = vset.pattern.permute.xlu0 0
  %59 = vperm.xlu0 %58, %v41
  %v60 = vpop.permute.xlu0 %59
  %63 = vset.pattern.permute.xlu0 0
  %64 = vperm.xlu0 %63, %v42
  %v65 = vpop.permute.xlu0 %64
  %68 = vset.pattern.permute.xlu0 0
  %69 = vperm.xlu0 %68, %v43
  %v70 = vpop.permute.xlu0 %69
  %73 = vset.pattern.permute.xlu0 0
  %74 = vperm.xlu0 %73, %v44
  %v75 = vpop.permute.xlu0 %74
  %78 = vset.pattern.permute.xlu0 0
  %79 = vperm.xlu0 %78, %v45
  %v80 = vpop.permute.xlu0 %79
  %83 = vset.pattern.permute.xlu0 0
  %84 = vperm.xlu0 %83, %v46
  %v85 = vpop.permute.xlu0 %84
  %v95 = vunpack.c.l.b16 %v23
  %v96 = vunpack.c.l.b16 %v24
  %v97 = vunpack.c.l.b16 %v25
  %v98 = vunpack.c.l.b16 %v26
  %v99 = vunpack.c.l.b16 %v27
  %v100 = vunpack.c.l.b16 %v28
  %v101 = vunpack.c.l.b16 %v29
  %v102 = vunpack.c.l.b16 %v30
  %v103 = vpack.c.b16 %v96, %v95
  %v104 = vpack.c.b16 %v98, %v97
  %v105 = vpack.c.b16 %v100, %v99
  %v106 = vpack.c.b16 %v102, %v101
  %v115 = vunpack.c.l.b16 %v31
  %v116 = vunpack.c.l.b16 %v32
  %v117 = vunpack.c.l.b16 %v33
  %v118 = vunpack.c.l.b16 %v34
  %v119 = vunpack.c.l.b16 %v35
  %v120 = vunpack.c.l.b16 %v36
  %v121 = vunpack.c.l.b16 %v37
  %v122 = vunpack.c.l.b16 %v38
  %v123 = vpack.c.b16 %v116, %v115
  %v124 = vpack.c.b16 %v118, %v117
  %v125 = vpack.c.b16 %v120, %v119
  %v126 = vpack.c.b16 %v122, %v121
  %vm131 = vcmask 523264
  %v133 = vsel %vm131, %v103, 0
  %v136 = vsel %vm131, %v104, 0
  %v139 = vsel %vm131, %v105, 0
  %v142 = vsel %vm131, %v106, 0
  %144 = vmatpush.bf16.msra.mxu0 0
  %145 = vmatpush.bf16.msra.mxu0 0
  %146 = vmatpush.bf16.msra.mxu0 0
  %147 = vmatpush.bf16.msra.mxu0 0
  %148 = vmatpush.bf16.msra.mxu0 %v126
  %149 = vmatpush.bf16.msra.mxu0 %v125
  %150 = vmatpush.bf16.msra.mxu0 %v124
  %151 = vmatpush.bf16.msra.mxu0 %v123
  %152 = vmatmul.bf16.gmra.mxu0 %v133
  %v153 = vpop.f32.mrf.mxu0
  %v154 = vadd.f32 %v50, %v153
  %v155 = vpop.f32.mrf.mxu0
  %v156 = vadd.f32 %v55, %v155
  %157 = vmatmul.bf16.gmra.mxu0 %v136
  %v158 = vpop.f32.mrf.mxu0
  %v159 = vadd.f32 %v60, %v158
  %v160 = vpop.f32.mrf.mxu0
  %v161 = vadd.f32 %v65, %v160
  %162 = vmatmul.bf16.gmra.mxu0 %v139
  %v163 = vpop.f32.mrf.mxu0
  %v164 = vadd.f32 %v70, %v163
  %v165 = vpop.f32.mrf.mxu0
  %v166 = vadd.f32 %v75, %v165
  %167 = vmatmul.bf16.gmra.mxu0 %v142
  %v168 = vpop.f32.mrf.mxu0
  %v169 = vadd.f32 %v80, %v168
  %v170 = vpop.f32.mrf.mxu0
  %v171 = vadd.f32 %v85, %v170
  %172 = vdwg.mxu0
  %v173 = vtanh.pop %v154
  %v174 = vtanh.pop %v156
  %v175 = vtanh.pop %v159
  %v176 = vtanh.pop %v161
  %v177 = vtanh.pop %v164
  %v178 = vtanh.pop %v166
  %v179 = vtanh.pop %v169
  %v180 = vtanh.pop %v171
  %v181 = vld [vmem:[%s3] sm:$0xf]
  %v182 = vld [vmem:[%s3 + $0x4] sm:$0xf]
  %v183 = vld [vmem:[%s3 + $0x8] sm:$0xf]
  %v184 = vld [vmem:[%s3 + $0xc] sm:$0xf]
  %v185 = vpack.c.bf16 %v174, %v173
  %v186 = vpack.c.bf16 %v176, %v175
  %v187 = vld [vmem:[%s4] sm:$0xff]
  %v188 = vld [vmem:[%s4 + $0x8] sm:$0xff]
  %v189 = vld [vmem:[%s4 + $0x10] sm:$0xff]
  %v190 = vld [vmem:[%s4 + $0x18] sm:$0xff]
  %192 = vset.pattern.permute.xlu0 0
  %193 = vperm.xlu0 %192, %v187
  %v194 = vpop.permute.xlu0 %193
  %197 = vset.pattern.permute.xlu0 0
  %198 = vperm.xlu0 %197, %v188
  %v199 = vpop.permute.xlu0 %198
  %202 = vset.pattern.permute.xlu0 0
  %203 = vperm.xlu0 %202, %v189
  %v204 = vpop.permute.xlu0 %203
  %207 = vset.pattern.permute.xlu0 0
  %208 = vperm.xlu0 %207, %v190
  %v209 = vpop.permute.xlu0 %208
  %v215 = vunpack.c.l.b16 %v181
  %v216 = vunpack.c.l.b16 %v182
  %v217 = vunpack.c.l.b16 %v183
  %v218 = vunpack.c.l.b16 %v184
  %v219 = vpack.c.b16 %v216, %v215
  %v220 = vpack.c.b16 %v218, %v217
  %vm221 = vcmask 261120
  %v223 = vsel %vm221, %v219, 0
  %v226 = vsel %vm221, %v220, 0
  %228 = vmatpush.bf16.msra.mxu0 0
  %229 = vmatpush.bf16.msra.mxu0 0
  %230 = vmatpush.bf16.msra.mxu0 0
  %231 = vmatpush.bf16.msra.mxu0 0
  %232 = vmatpush.bf16.msra.mxu0 0
  %233 = vmatpush.bf16.msra.mxu0 0
  %234 = vmatpush.bf16.msra.mxu0 %v186
  %235 = vmatpush.bf16.msra.mxu0 %v185
  %236 = vmatmul.bf16.gmra.mxu0 %v223
  %v237 = vpop.f32.mrf.mxu0
  %v238 = vadd.f32 %v194, %v237
  %v239 = vpop.f32.mrf.mxu0
  %v240 = vadd.f32 %v199, %v239
  %241 = vmatmul.bf16.gmra.mxu0 %v226
  %v242 = vpop.f32.mrf.mxu0
  %v243 = vadd.f32 %v204, %v242
  %v244 = vpop.f32.mrf.mxu0
  %v245 = vadd.f32 %v209, %v244
  %246 = vdwg.mxu0
  %v247 = vsub.f32 %v238, %v177
  %v248 = vsub.f32 %v240, %v178
  %v249 = vsub.f32 %v243, %v179
  %v250 = vsub.f32 %v245, %v180
  %251 = vst [vmem:[%s5] sm:$0xff] %v173
  %252 = vst [vmem:[%s5 + $0x8] sm:$0xff] %v174
  %253 = vst [vmem:[%s5 + $0x10] sm:$0xff] %v175
  %254 = vst [vmem:[%s5 + $0x18] sm:$0xff] %v176
  %255 = vst [vmem:[%s5 + $0x20] sm:$0xff] %v177
  %256 = vst [vmem:[%s5 + $0x28] sm:$0xff] %v178
  %257 = vst [vmem:[%s5 + $0x30] sm:$0xff] %v179
  %258 = vst [vmem:[%s5 + $0x38] sm:$0xff] %v180
  %v259 = vmul.f32 %v247, %v247
  %v260 = vmul.f32 %v248, %v248
  %v261 = vmul.f32 %v249, %v249
  %v262 = vmul.f32 %v250, %v250
  %v263 = vadd.f32 %v259, %v260
  %v264 = vadd.f32 %v263, %v261
  %v265 = vadd.f32 %v264, %v262
  %v266 = vrot.slane %v265, 4
  %v267 = vadd.f32 %v265, %v266
  %v268 = vrot.slane %v267, 2
  %v269 = vadd.f32 %v267, %v268
  %v270 = vrot.slane %v269, 1
  %v271 = vadd.f32 %v269, %v270
  %272 = vst [vmem:[%s6] sm:$0x1] %v271
  // Predicated region
  $region22: #{meta_mobility_forward.1} parent=0 // pred_check
    _
  $region23: #{meta_mobility_forward.1} parent=0 // pred_check_branch
    %274 = sbr.rel (0) target = $region25
  $region24: #{meta_mobility_forward.1} parent=0 // pred_region
    _
  $region25: #{meta_mobility_forward.1} parent=0 // pred_fallthru
    _
  // Predicated region
  $region26: #{meta_mobility_forward.1} parent=0 // pred_check
    _
  $region27: #{meta_mobility_forward.1} parent=0 // pred_check_branch
    %276 = sbr.rel (0) target = $region29
  $region28: #{meta_mobility_forward.1} parent=0 // pred_region
    _
  $region29: #{meta_mobility_forward.1} parent=0 // pred_fallthru
    _
  // Predicated region
  $region30: #{meta_mobility_forward.1} parent=0 // pred_check
    _
  $region31: #{meta_mobility_forward.1} parent=0 // pred_check_branch
    %278 = sbr.rel (0) target = $region33
  $region32: #{meta_mobility_forward.1} parent=0 // pred_region
    _
  $region33: #{meta_mobility_forward.1} parent=0 // pred_fallthru
    _
  // Predicated region
  $region34: #{meta_mobility_forward.1} parent=0 // pred_check
    _
  $region35: #{meta_mobility_forward.1} parent=0 // pred_check_branch
    %280 = sbr.rel (0) target = $region37
  $region36: #{meta_mobility_forward.1} parent=0 // pred_region
    _
  $region37: #{meta_mobility_forward.1} parent=0 // pred_fallthru
    _

</llo_original>
